<compile_context>
chip_gen: v7x
topology: tpu7x:2x2x1
jax: 0.10.0
libtpu: 0.0.40
codegen_flags: <defaults>
</compile_context>

<pallas_src>
import jax
import jax.numpy as jnp
from jax.experimental import pallas as pl
from jax.experimental.pallas import tpu as pltpu

LANE = 128


def _matmul_kernel(x_ref, w_ref, o_ref):
    # Pure MXU matmul; interpolation coefficient z is already folded into w.
    o_ref[...] = jnp.dot(
        x_ref[...], w_ref[...], preferred_element_type=jnp.float32
    ).astype(o_ref.dtype)


def generator_forward(
    x,
    weight,
    z,
    *,
    block_m: int = 8192,                       # reshaped (lane-dense) rows per tile
    single_pass_limit_bytes: int = 8 * 1024 * 1024,
    force_grid: bool = False,
):
    """x: (M, D), weight: (D, D) in PyTorch (out, in) layout, z: scalar.
    Returns (M, D) = z * (x @ W^T) + (1 - z) * x."""
    M, K = x.shape
    N, K2 = weight.shape
    assert K == K2 and N == K, "Generator is a square map (in_dim == out_dim)"
    dtype = x.dtype

    # --- Fold z into the weight:  out = x @ (z * W^T + (1 - z) * I) -----------
    z32 = jnp.asarray(z, dtype=jnp.float32)
    w_eff = (
        z32 * weight.T.astype(jnp.float32)
        + (1.0 - z32) * jnp.eye(K, dtype=jnp.float32)
    ).astype(weight.dtype)

    # --- Lane-densify: view (M, K) as (M/R, R*K) with a block-diagonal weight -
    if K < LANE and LANE % K == 0:
        R = LANE // K
        pad = (-M) % R
        x_in = jnp.pad(x, ((0, pad), (0, 0))) if pad else x
        Mr = (M + pad) // R
        L = LANE
        x_in = x_in.reshape(Mr, L)
        w_in = jnp.kron(jnp.eye(R, dtype=w_eff.dtype), w_eff)   # (128, 128) block-diag
    else:
        R, pad, Mr, L = 1, 0, M, K
        x_in, w_in = x, w_eff

    # --- Path selection: VMEM-byte-based cutoff --------------------------------
    lane_padded = -(-L // LANE) * LANE
    row_padded = -(-Mr // 8) * 8
    xo_bytes = 2 * row_padded * lane_padded * x_in.dtype.itemsize   # x tile + out tile
    use_grid = (force_grid or xo_bytes > single_pass_limit_bytes) and Mr >= 8

    if not use_grid:
        # Small/medium problem: everything resident in VMEM, single MXU pass,
        # no grid / pipeline machinery at all.
        out_r = pl.pallas_call(
            _matmul_kernel,
            out_shape=jax.ShapeDtypeStruct((Mr, L), dtype),
            in_specs=[
                pl.BlockSpec(memory_space=pltpu.MemorySpace.VMEM),
                pl.BlockSpec(memory_space=pltpu.MemorySpace.VMEM),
            ],
            out_specs=pl.BlockSpec(memory_space=pltpu.MemorySpace.VMEM),
        )(x_in, w_in)
    else:
        # Huge batch: tile rows (pipelined, "parallel" so it can shard across
        # TensorCores); weight stays resident.
        bm = min(block_m, Mr)
        grid_m = pl.cdiv(Mr, bm)
        if grid_m > 1 and grid_m % 2 == 1:      # even grid for v7x's 2 TCs
            grid_m += 1
            bm = pl.cdiv(Mr, grid_m)
        bm = max(8, -(-bm // 8) * 8)            # sublane-aligned tile
        grid_m = pl.cdiv(Mr, bm)

        out_r = pl.pallas_call(
            _matmul_kernel,
            out_shape=jax.ShapeDtypeStruct((Mr, L), dtype),
            grid=(grid_m,),
            in_specs=[
                pl.BlockSpec((bm, L), lambda i: (i, 0)),
                pl.BlockSpec((L, L), lambda i: (0, 0)),
            ],
            out_specs=pl.BlockSpec((bm, L), lambda i: (i, 0)),
            compiler_params=pltpu.CompilerParams(
                dimension_semantics=("parallel",),
                vmem_limit_bytes=48 * 1024 * 1024,
            ),
        )(x_in, w_in)

    # --- Undo the lane-dense view ----------------------------------------------
    if R > 1:
        out = out_r.reshape(Mr * R, K)
        if pad:
            out = out[:M]
        return out
    return out_r


def generator_reference(x, weight, z):
    mapped = x @ weight.T
    return z * mapped + (1.0 - z) * x


if __name__ == "__main__":
    # params.emb_dim_autoenc = 32 (square mapping), small batch = 8
    emb_dim_autoenc = 32
    batch = 8

    key = jax.random.PRNGKey(0)
    kx, kw, kx2, kx3 = jax.random.split(key, 4)

    x = jax.random.normal(kx, (batch, emb_dim_autoenc), dtype=jnp.float32)
    # nn.Linear default init: uniform(-1/sqrt(in_dim), 1/sqrt(in_dim))
    bound = 1.0 / (emb_dim_autoenc ** 0.5)
    weight = jax.random.uniform(
        kw, (emb_dim_autoenc, emb_dim_autoenc),
        minval=-bound, maxval=bound, dtype=jnp.float32)
    z = 0.7

    # 1) Small batch: single-pass, lane-dense (2, 128) @ (128, 128) resident path.
    out = jax.block_until_ready(generator_forward(x, weight, z))
    ref = generator_reference(x, weight, z)
    assert out.shape == (batch, emb_dim_autoenc)
    assert jnp.allclose(out, ref, atol=1e-5, rtol=1e-5), "small-path mismatch"

    # 2) Row count not divisible by 4: exercises the pad + reshape path.
    x_odd = jax.random.normal(kx2, (10, emb_dim_autoenc), dtype=jnp.float32)
    out_odd = jax.block_until_ready(generator_forward(x_odd, weight, z))
    assert jnp.allclose(out_odd, generator_reference(x_odd, weight, z),
                        atol=1e-5, rtol=1e-5), "pad-path mismatch"

    # 3) Force the tiled 'parallel' grid path (small tile just to exercise it).
    x_big = jax.random.normal(kx3, (1024, emb_dim_autoenc), dtype=jnp.float32)
    out_big = jax.block_until_ready(
        generator_forward(x_big, weight, z, force_grid=True, block_m=128))
    assert jnp.allclose(out_big, generator_reference(x_big, weight, z),
                        atol=1e-5, rtol=1e-5), "tiled-path mismatch"

    print("KERNEL_OK")
</pallas_src>

<mosaic_0001>
module attributes {stable_mosaic.version = 11 : i64} {
  func.func @_matmul_kernel(%arg0: memref<2x128xf32, #tpu.memory_space<vmem>>, %arg1: memref<128x128xf32, #tpu.memory_space<vmem>>, %arg2: memref<2x128xf32, #tpu.memory_space<vmem>>) attributes {dimension_semantics = [], scalar_prefetch = 0 : i64, scratch_operands = 0 : i64, tpu.core_type = #tpu.core_type<tc>} {
    %c0 = arith.constant 0 : index
    %c0_0 = arith.constant 0 : index
    %0 = vector.load %arg0[%c0, %c0_0] : memref<2x128xf32, #tpu.memory_space<vmem>>, vector<2x128xf32>
    %c0_1 = arith.constant 0 : index
    %c0_2 = arith.constant 0 : index
    %1 = vector.load %arg1[%c0_1, %c0_2] : memref<128x128xf32, #tpu.memory_space<vmem>>, vector<128x128xf32>
    %cst = arith.constant dense<0.000000e+00> : vector<2x128xf32>
    %2 = tpu.matmul %0, %1, %cst {dimension_numbers = #tpu.dot_dimension_numbers<[1], [0], [0], [1], [0, 0, 1, 1], [], []>} : vector<2x128xf32>, vector<128x128xf32>, vector<2x128xf32> -> vector<2x128xf32>
    %c0_3 = arith.constant 0 : index
    %c0_4 = arith.constant 0 : index
    %3 = vector.load %arg2[%c0_3, %c0_4] : memref<2x128xf32, #tpu.memory_space<vmem>>, vector<2x128xf32>
    tpu.vector_store %arg2[%c0_3, %c0_4], %2 {strides = array<i32>} : memref<2x128xf32, #tpu.memory_space<vmem>>, vector<2x128xf32>,
    return
  }
}

</mosaic_0001>

<llo_original>
// kernel: tpu_custom_call.1
$region0: #{tpu_custom_call.1}
  #allocation0 [shape = 'u32[]', space=smem, size = 0x4, offset = 0x4, fixed_abs, tag = 'smem constant byte address 0x4 - core index']
  #allocation1 [shape = 'u32[144,128]{1,0:T(1,128)}', space=vmem, size = 0x12000, scoped, tag = 'internal scratch']
  %s0 = inlined_call_operand.hbm [shape: f32[2,128], index: 0, kind: input, shape index: {}]
  %s1 = inlined_call_operand.hbm [shape: f32[128,128], index: 1, kind: input, shape index: {}]
  %s2 = inlined_call_operand.hbm [shape: f32[2,128], index: 2, kind: output, shape index: {}]
  %s3 = sld [smem:[#allocation0]]
  $region26: #{tpu_custom_call.1} parent=0
    _
  %s5 = ssub.s32 1, %s3
  %s6 = scalar_select 0, %s5, %s3
  $region1: #{tpu_custom_call.1} parent=0
    #allocation2 [shape = 'u8[1024]{0}', space=vmem, size = 0x400, scoped, tag = 'input window, operand 0, single buffered']
    #allocation3 [shape = 's32[1]{0}', space=sflag, size = 0x4, scoped, tag = 'scoped memory for tpu_custom_call.1']
    #allocation4 [shape = 's32[1]{0}', space=sflag, size = 0x4, scoped, tag = 'scoped memory for tpu_custom_call.1']
    #allocation5 [shape = 'u8[65536]{0}', space=vmem, size = 0x10000, scoped, tag = 'input window, operand 1, single buffered']
    #allocation6 [shape = 's32[1]{0}', space=sflag, size = 0x4, scoped, tag = 'scoped memory for tpu_custom_call.1']
    #allocation7 [shape = 'u8[1024]{0}', space=vmem, size = 0x400, scoped, tag = 'output window, operand 0, single buffered']
    %7 = vsyncpa [#allocation3], 0
    %8 = vsyncpa [#allocation6], 0
    %9 = vsyncpa [#allocation4], 0
    // Predicated region
    $region2: #{tpu_custom_call.1} parent=1 // pred_check
      _
    $region3: #{tpu_custom_call.1} parent=1 // pred_check_branch
      %11 = sbr.rel (0) target = $region5
    $region4: #{tpu_custom_call.1} parent=1 // pred_region
      %s13 = ssub.s32 32, 32
      %14 = vsyncadd [#allocation3], %s13
      %s16 = sshll.u32 [#allocation2], 4
      %s17 = int_to_ptr.vmem [resolvable:$true] %s16
      %19 = dma.hbm_to_vmem [thread:$0]  %s0, 32, %s17, [#allocation3]
    $region5: #{tpu_custom_call.1} parent=1 // pred_fallthru
      _
    // Predicated region
    $region6: #{tpu_custom_call.1} parent=1 // pred_check
      _
    $region7: #{tpu_custom_call.1} parent=1 // pred_check_branch
      %21 = sbr.rel (0) target = $region9
    $region8: #{tpu_custom_call.1} parent=1 // pred_region
      %s23 = ssub.s32 2048, 2048
      %24 = vsyncadd [#allocation6], %s23
      %s25 = sshll.u32 [#allocation5], 4
      %s26 = int_to_ptr.vmem [resolvable:$true] %s25
      %31 = dma.hbm_to_vmem [thread:$0]  %s1, 2048, %s26, [#allocation6], 128, 128, 8
    $region9: #{tpu_custom_call.1} parent=1 // pred_fallthru
      _
    // Predicated region
    $region10: #{tpu_custom_call.1} parent=1 // pred_check
      _
    $region11: #{tpu_custom_call.1} parent=1 // pred_check_branch
      %33 = sbr.rel (0) target = $region13
    $region12: #{tpu_custom_call.1} parent=1 // pred_region
      %34 = dma.done [#allocation3], 32
    $region13: #{tpu_custom_call.1} parent=1 // pred_fallthru
      _
    // Predicated region
    $region14: #{tpu_custom_call.1} parent=1 // pred_check
      _
    $region15: #{tpu_custom_call.1} parent=1 // pred_check_branch
      %36 = sbr.rel (0) target = $region17
    $region16: #{tpu_custom_call.1} parent=1 // pred_region
      %37 = dma.done [#allocation6], 2048
    $region17: #{tpu_custom_call.1} parent=1 // pred_fallthru
      _
    %v38 = vld [vmem:[#allocation2] sm:$0x3]
    %v39 = vld [vmem:[#allocation5] sm:$0xff]
    %v40 = vld [vmem:[#allocation5 + $0x8] sm:$0xff]
    %v41 = vld [vmem:[#allocation5 + $0x10] sm:$0xff]
    %v42 = vld [vmem:[#allocation5 + $0x18] sm:$0xff]
    %v43 = vld [vmem:[#allocation5 + $0x20] sm:$0xff]
    %v44 = vld [vmem:[#allocation5 + $0x28] sm:$0xff]
    %v45 = vld [vmem:[#allocation5 + $0x30] sm:$0xff]
    %v46 = vld [vmem:[#allocation5 + $0x38] sm:$0xff]
    %v47 = vld [vmem:[#allocation5 + $0x40] sm:$0xff]
    %v48 = vld [vmem:[#allocation5 + $0x48] sm:$0xff]
    %v49 = vld [vmem:[#allocation5 + $0x50] sm:$0xff]
    %v50 = vld [vmem:[#allocation5 + $0x58] sm:$0xff]
    %v51 = vld [vmem:[#allocation5 + $0x60] sm:$0xff]
    %v52 = vld [vmem:[#allocation5 + $0x68] sm:$0xff]
    %v53 = vld [vmem:[#allocation5 + $0x70] sm:$0xff]
    %v54 = vld [vmem:[#allocation5 + $0x78] sm:$0xff]
    %55 = vmatprep.subr.mxu0 0.0
    %56 = vmatpush1.msra.mxu0 %v39
    %57 = vmatprep.subr.mxu0 0.0
    %58 = vmatpush1.msra.mxu0 %v40
    %59 = vmatprep.subr.mxu0 0.0
    %60 = vmatpush1.msra.mxu0 %v41
    %61 = vmatprep.subr.mxu0 0.0
    %62 = vmatpush1.msra.mxu0 %v42
    %63 = vmatprep.subr.mxu0 0.0
    %64 = vmatpush1.msra.mxu0 %v43
    %65 = vmatprep.subr.mxu0 0.0
    %66 = vmatpush1.msra.mxu0 %v44
    %67 = vmatprep.subr.mxu0 0.0
    %68 = vmatpush1.msra.mxu0 %v45
    %69 = vmatprep.subr.mxu0 0.0
    %70 = vmatpush1.msra.mxu0 %v46
    %71 = vmatprep.subr.mxu0 0.0
    %72 = vmatpush1.msra.mxu0 %v47
    %73 = vmatprep.subr.mxu0 0.0
    %74 = vmatpush1.msra.mxu0 %v48
    %75 = vmatprep.subr.mxu0 0.0
    %76 = vmatpush1.msra.mxu0 %v49
    %77 = vmatprep.subr.mxu0 0.0
    %78 = vmatpush1.msra.mxu0 %v50
    %79 = vmatprep.subr.mxu0 0.0
    %80 = vmatpush1.msra.mxu0 %v51
    %81 = vmatprep.subr.mxu0 0.0
    %82 = vmatpush1.msra.mxu0 %v52
    %83 = vmatprep.subr.mxu0 0.0
    %84 = vmatpush1.msra.mxu0 %v53
    %85 = vmatprep.subr.mxu0 0.0
    %86 = vmatpush1.msra.mxu0 %v54
    %87 = vmatprep.subr.mxu0 0.0
    %88 = vmatpush1.msra.mxu0 0.0
    %89 = vmatprep.subr.mxu0 0.0
    %90 = vmatpush1.msra.mxu0 0.0
    %91 = vmatprep.subr.mxu0 0.0
    %92 = vmatpush1.msra.mxu0 0.0
    %93 = vmatprep.subr.mxu0 0.0
    %94 = vmatpush1.msra.mxu0 0.0
    %95 = vmatprep.subr.mxu0 0.0
    %96 = vmatpush1.msra.mxu0 0.0
    %97 = vmatprep.subr.mxu0 0.0
    %98 = vmatpush1.msra.mxu0 0.0
    %99 = vmatprep.subr.mxu0 0.0
    %100 = vmatpush1.msra.mxu0 0.0
    %101 = vmatprep.subr.mxu0 0.0
    %102 = vmatpush1.msra.mxu0 0.0
    %103 = vmatprep.subr.mxu0 0.0
    %104 = vmatpush1.msra.mxu0 0.0
    %105 = vmatprep.subr.mxu0 0.0
    %106 = vmatpush1.msra.mxu0 0.0
    %107 = vmatprep.subr.mxu0 0.0
    %108 = vmatpush1.msra.mxu0 0.0
    %109 = vmatprep.subr.mxu0 0.0
    %110 = vmatpush1.msra.mxu0 0.0
    %111 = vmatprep.subr.mxu0 0.0
    %112 = vmatpush1.msra.mxu0 0.0
    %113 = vmatprep.subr.mxu0 0.0
    %114 = vmatpush1.msra.mxu0 0.0
    %115 = vmatprep.subr.mxu0 0.0
    %116 = vmatpush1.msra.mxu0 0.0
    %117 = vmatprep.subr.mxu0 0.0
    %118 = vmatpush1.msra.mxu0 0.0
    %119 = vmatprep.mubr.f32.mxu0 0.0
    %120 = vmatmul.mubr.f32.gmra.mrb[0].mxu0 %v38
    %v121 = vpop.f32.mrb[0].mxu0
    %v122 = vadd.f32 0.0, %v121
    %v123 = vpop.f32.mrb[0].mxu0
    %124 = vdwg.mxu0
    %125 = vst [vmem:[#allocation7] sm:$0x3] %v122
    // Predicated region
    $region18: #{tpu_custom_call.1} parent=1 // pred_check
      _
    $region19: #{tpu_custom_call.1} parent=1 // pred_check_branch
      %127 = sbr.rel (0) target = $region21
    $region20: #{tpu_custom_call.1} parent=1 // pred_region
      %s129 = ssub.s32 32, 32
      %130 = vsyncadd [#allocation4], %s129
      %s132 = sshll.u32 [#allocation7], 4
      %s133 = int_to_ptr.vmem [resolvable:$true] %s132
      %135 = dma.vmem_to_hbm [thread:$0]  %s133, 32, %s2, [#allocation4]
    $region21: #{tpu_custom_call.1} parent=1 // pred_fallthru
      _
    // Predicated region
    $region22: #{tpu_custom_call.1} parent=1 // pred_check
      _
    $region23: #{tpu_custom_call.1} parent=1 // pred_check_branch
      %137 = sbr.rel (0) target = $region25
    $region24: #{tpu_custom_call.1} parent=1 // pred_region
      %138 = dma.done [#allocation4], 32
    $region25: #{tpu_custom_call.1} parent=1 // pred_fallthru
      _
    %139 = vsyncpa [#allocation3], 1
    %140 = vsyncpa [#allocation6], 1
    %141 = vsyncpa [#allocation4], 1

</llo_original>
